<compile_context>
chip_gen: v5e
topology: v5e:2x2
jax: 0.10.0
libtpu: 0.0.40
codegen_flags: <defaults>
</compile_context>

<pallas_src>
import functools

import jax
import jax.numpy as jnp
from jax import lax
from jax.experimental import pallas as pl
from jax.experimental.pallas import tpu as pltpu


# --------------------------------------------------------------------- helpers
def _round_up(n, m):
    return ((n + m - 1) // m) * m


def _cdiv(a, b):
    return -(-a // b)


def _chip_caps():
    """Per-generation tiling caps (batch-tile rows, vmem limit, min grid steps)."""
    kind = ""
    try:
        kind = jax.devices()[0].device_kind.lower()
    except Exception:
        pass
    if "v7" in kind or "7x" in kind:
        # v7x: 64 MiB physical VMEM, 2 TensorCores -> smaller tiles, >= 2 steps.
        return {"bm_cap": 512, "vmem_limit": 32 * 1024 * 1024, "min_tiles": 2}
    # v5e / v6e (and older): 128 MiB VMEM, 1 TC -> big tiles, fewer grid steps.
    return {"bm_cap": 1024, "vmem_limit": 64 * 1024 * 1024, "min_tiles": 1}


def _pick_batch_tiling(batch, caps):
    """Returns (bm, padded_batch, n_tiles)."""
    b8 = _round_up(batch, 8)
    if b8 < 64 or (caps["min_tiles"] == 1 and b8 <= caps["bm_cap"]):
        # Single tile: block dims == full array dims, so no batch padding at all.
        # (For such tiny batches the kernel is pure launch overhead anyway.)
        return batch, batch, 1
    n_tiles = max(caps["min_tiles"], _cdiv(b8, caps["bm_cap"]))
    if caps["min_tiles"] > 1 and n_tiles % 2:
        n_tiles += 1  # even number of steps -> both v7x TCs get equal work
    bm = _round_up(_cdiv(b8, n_tiles), 8)
    padded = _round_up(b8, bm)
    return bm, padded, padded // bm


# ---------------------------------------------------------------------- kernel
def _actor_mlp_kernel(x_ref, w1_ref, b1_ref, w2_ref, b2_ref, w3_ref, b3_ref,
                      out_ref, *, max_action, n_tanh):
    """Fused 3-layer MLP: out = head(relu(relu(x@W1+b1)@W2+b2)@W3+b3).

    head: columns [0, n_tanh) get max_action*tanh(.), the rest pass through raw.
    Student: n_tanh >= out width -> plain tanh head.
    Teacher: n_tanh = 2, columns 2:4 are the un-squashed 'when' head.
    """
    x = x_ref[...]
    h = jnp.maximum(
        jnp.dot(x, w1_ref[...], preferred_element_type=jnp.float32) + b1_ref[...],
        0.0)
    h = jnp.maximum(
        jnp.dot(h, w2_ref[...], preferred_element_type=jnp.float32) + b2_ref[...],
        0.0)
    y = jnp.dot(h, w3_ref[...], preferred_element_type=jnp.float32) + b3_ref[...]

    if n_tanh >= out_ref.shape[-1]:
        out_ref[...] = (max_action * jnp.tanh(y)).astype(out_ref.dtype)
    else:
        col = lax.broadcasted_iota(jnp.int32, y.shape, 1)
        out_ref[...] = jnp.where(
            col < n_tanh, max_action * jnp.tanh(y), y).astype(out_ref.dtype)


# --------------------------------------------------------------------- wrapper
# Resolved lazily: set to False if this JAX build rejects single-buffered specs.
_SINGLE_BUFFER_WEIGHTS_OK = [True]


def _const_specs(shapes, single_buffer):
    const = lambda i: (0, 0)  # weights/biases stay VMEM-resident across the grid
    if single_buffer:
        return [pl.BlockSpec(s, const, pipeline_mode=pl.Buffered(1)) for s in shapes]
    return [pl.BlockSpec(s, const) for s in shapes]


def _fused_mlp(x, w1, b1, w2, b2, w3, b3, *, max_action, n_tanh):
    """Run the fused kernel.  Weights/biases must already be kernel-ready
    (hidden dim padded, teacher heads merged) -- see prepare_actor_params."""
    batch, in_dim = x.shape
    hp = w1.shape[1]
    out_dim = w3.shape[1]

    caps = _chip_caps()
    bm, b_pad, n_tiles = _pick_batch_tiling(batch, caps)
    xp = x if b_pad == batch else jnp.pad(x, ((0, b_pad - batch), (0, 0)))

    kernel = functools.partial(
        _actor_mlp_kernel,
        max_action=float(max_action),
        n_tanh=(out_dim if n_tanh is None else int(n_tanh)),
    )
    w_shapes = [(in_dim, hp), (1, hp), (hp, hp), (1, hp), (hp, out_dim), (1, out_dim)]

    def run(single_buffer):
        return pl.pallas_call(
            kernel,
            out_shape=jax.ShapeDtypeStruct((b_pad, out_dim), jnp.float32),
            grid=(n_tiles,),
            in_specs=[pl.BlockSpec((bm, in_dim), lambda i: (i, 0))]
                     + _const_specs(w_shapes, single_buffer),
            out_specs=pl.BlockSpec((bm, out_dim), lambda i: (i, 0)),
            compiler_params=pltpu.CompilerParams(
                dimension_semantics=("parallel",),
                vmem_limit_bytes=caps["vmem_limit"],
            ),
        )(xp, w1, b1, w2, b2, w3, b3)

    out = None
    if _SINGLE_BUFFER_WEIGHTS_OK[0]:
        try:
            out = run(True)
        except Exception:
            _SINGLE_BUFFER_WEIGHTS_OK[0] = False  # fall back to default buffering
    if out is None:
        out = run(False)

    return out if b_pad == batch else out[:batch]


def actor_forward_student(x, prepared_params, max_action):
    """x: (B, actor_input_dim) -> (B, actor_output_dim)."""
    w1, b1, w2, b2, w3, b3 = prepared_params
    return _fused_mlp(x, w1, b1, w2, b2, w3, b3,
                      max_action=max_action, n_tanh=None)


def actor_forward_teacher(x, prepared_params, max_action):
    """x: (B, actor_input_dim) -> ((B, 2) 'what', (B, 2) 'when')."""
    w1, b1, w2, b2, w3, b3 = prepared_params   # heads pre-merged: w3 is (Hp, 4)
    y = _fused_mlp(x, w1, b1, w2, b2, w3, b3,
                   max_action=max_action, n_tanh=2)
    return y[:, :2], y[:, 2:4]


# ---------------------------------------------------------------- param init/prep
def _linear_params(key, fan_in, fan_out):
    """PyTorch nn.Linear-style init, uniform(+-1/sqrt(fan_in)); weight (in, out)."""
    kw, kb = jax.random.split(key)
    bound = 1.0 / jnp.sqrt(jnp.float32(fan_in))
    w = jax.random.uniform(kw, (fan_in, fan_out), jnp.float32, -bound, bound)
    b = jax.random.uniform(kb, (1, fan_out), jnp.float32, -bound, bound)
    return w, b


def make_actor_params(key, actor_input_dim, actor_output_dim, n_hidden, name):
    """Raw (unpadded, unmerged) parameters -- the PyTorch-equivalent state."""
    keys = jax.random.split(key, 4)
    w1, b1 = _linear_params(keys[0], actor_input_dim, n_hidden)
    w2, b2 = _linear_params(keys[1], n_hidden, n_hidden)
    if "teacher" in name:
        w3w, b3w = _linear_params(keys[2], n_hidden, 2)
        w3n, b3n = _linear_params(keys[3], n_hidden, 2)
        return (w1, b1, w2, b2, w3w, b3w, w3n, b3n)
    w3, b3 = _linear_params(keys[2], n_hidden, actor_output_dim)
    return (w1, b1, w2, b2, w3, b3)


def prepare_actor_params(raw_params, name):
    """One-time kernel prep (do ONCE, cache the result):
      - merge the teacher's two heads into a single (H, 4) matmul,
      - zero-pad the hidden dim to a multiple of 128 (mathematically inert
        through relu/matmul; gives lane-aligned weight layouts).
    The per-call path then does no parameter padding / concatenation at all.
    """
    if "teacher" in name:
        w1, b1, w2, b2, w3w, b3w, w3n, b3n = raw_params
        w3 = jnp.concatenate([w3w, w3n], axis=1)     # (H, 4)
        b3 = jnp.concatenate([b3w, b3n], axis=1)     # (1, 4)
    else:
        w1, b1, w2, b2, w3, b3 = raw_params
    hid = w1.shape[1]
    pad_h = _round_up(hid, 128) - hid
    w1p = jnp.pad(w1, ((0, 0), (0, pad_h)))
    b1p = jnp.pad(b1, ((0, 0), (0, pad_h)))
    w2p = jnp.pad(w2, ((0, pad_h), (0, pad_h)))
    b2p = jnp.pad(b2, ((0, 0), (0, pad_h)))
    w3p = jnp.pad(w3, ((0, pad_h), (0, 0)))
    return (w1p, b1p, w2p, b2p, w3p, b3)


# ------------------------------------------------------------- pure-JAX reference
def _ref_student(x, raw_params, max_action):
    w1, b1, w2, b2, w3, b3 = raw_params
    h = jnp.maximum(x @ w1 + b1, 0.0)
    h = jnp.maximum(h @ w2 + b2, 0.0)
    return max_action * jnp.tanh(h @ w3 + b3)


def _ref_teacher(x, raw_params, max_action):
    w1, b1, w2, b2, w3w, b3w, w3n, b3n = raw_params
    h = jnp.maximum(x @ w1 + b1, 0.0)
    h = jnp.maximum(h @ w2 + b2, 0.0)
    return max_action * jnp.tanh(h @ w3w + b3w), h @ w3n + b3n


# ------------------------------------------------------------------------ main
if __name__ == "__main__":
    key = jax.random.PRNGKey(0)
    k_s, k_t, k_x = jax.random.split(key, 3)

    batch = 4
    actor_input_dim = 16
    actor_output_dim = 8
    n_hidden = 32
    max_action = 2.0

    x = jax.random.normal(k_x, (batch, actor_input_dim), jnp.float32)

    # --- student actor ("actor": single head, tanh squash) -------------------
    raw_s = make_actor_params(k_s, actor_input_dim, actor_output_dim,
                              n_hidden, name="actor")
    prep_s = prepare_actor_params(raw_s, name="actor")          # one-time, cached
    y = jax.block_until_ready(actor_forward_student(x, prep_s, max_action))
    y_ref = _ref_student(x, raw_s, max_action)
    assert y.shape == (batch, actor_output_dim)
    assert jnp.allclose(y, y_ref, atol=1e-5, rtol=1e-5)

    # --- teacher actor ("teacher": 'what' squashed + 'when' raw heads) -------
    raw_t = make_actor_params(k_t, actor_input_dim, actor_output_dim,
                              n_hidden, name="teacher")
    prep_t = prepare_actor_params(raw_t, name="teacher")        # one-time, cached
    x_what, x_when = actor_forward_teacher(x, prep_t, max_action)
    x_what = jax.block_until_ready(x_what)
    x_when = jax.block_until_ready(x_when)
    w_ref, n_ref = _ref_teacher(x, raw_t, max_action)
    assert x_what.shape == (batch, 2) and x_when.shape == (batch, 2)
    assert jnp.allclose(x_what, w_ref, atol=1e-5, rtol=1e-5)
    assert jnp.allclose(x_when, n_ref, atol=1e-5, rtol=1e-5)

    # --- large batch: exercises the multi-tile / multi-TensorCore grid path --
    xb = jax.random.normal(jax.random.fold_in(k_x, 1),
                           (2048, actor_input_dim), jnp.float32)
    yb = jax.block_until_ready(actor_forward_student(xb, prep_s, max_action))
    assert yb.shape == (2048, actor_output_dim)
    assert jnp.allclose(yb, _ref_student(xb, raw_s, max_action),
                        atol=1e-4, rtol=1e-4)

    print("KERNEL_OK")
</pallas_src>

<mosaic_0001>
module attributes {stable_mosaic.version = 11 : i64} {
  func.func @_actor_mlp_kernel(%arg0: i32, %arg1: memref<4x16xf32, #tpu.memory_space<vmem>>, %arg2: memref<16x128xf32, #tpu.memory_space<vmem>>, %arg3: memref<1x128xf32, #tpu.memory_space<vmem>>, %arg4: memref<128x128xf32, #tpu.memory_space<vmem>>, %arg5: memref<1x128xf32, #tpu.memory_space<vmem>>, %arg6: memref<128x8xf32, #tpu.memory_space<vmem>>, %arg7: memref<1x8xf32, #tpu.memory_space<vmem>>, %arg8: memref<4x8xf32, #tpu.memory_space<vmem>>) attributes {dimension_semantics = [#tpu.dimension_semantics<parallel>], iteration_bounds = array<i64: 1>, scalar_prefetch = 0 : i64, scratch_operands = 0 : i64, tpu.core_type = #tpu.core_type<tc>, window_params = [{transform_indices = @transform_0, window_bounds = array<i64: 4, 16>}, {pipeline_mode = #tpu.pipeline_mode<synchronous>, transform_indices = @transform_1, window_bounds = array<i64: 16, 128>}, {pipeline_mode = #tpu.pipeline_mode<synchronous>, transform_indices = @transform_2, window_bounds = array<i64: 1, 128>}, {pipeline_mode = #tpu.pipeline_mode<synchronous>, transform_indices = @transform_3, window_bounds = array<i64: 128, 128>}, {pipeline_mode = #tpu.pipeline_mode<synchronous>, transform_indices = @transform_4, window_bounds = array<i64: 1, 128>}, {pipeline_mode = #tpu.pipeline_mode<synchronous>, transform_indices = @transform_5, window_bounds = array<i64: 128, 8>}, {pipeline_mode = #tpu.pipeline_mode<synchronous>, transform_indices = @transform_6, window_bounds = array<i64: 1, 8>}, {transform_indices = @transform_7, window_bounds = array<i64: 4, 8>}]} {
    %c0 = arith.constant 0 : index
    %c0_0 = arith.constant 0 : index
    %0 = vector.load %arg1[%c0, %c0_0] : memref<4x16xf32, #tpu.memory_space<vmem>>, vector<4x16xf32>
    %c0_1 = arith.constant 0 : index
    %c0_2 = arith.constant 0 : index
    %1 = vector.load %arg2[%c0_1, %c0_2] : memref<16x128xf32, #tpu.memory_space<vmem>>, vector<16x128xf32>
    %cst = arith.constant dense<0.000000e+00> : vector<4x128xf32>
    %2 = tpu.matmul %0, %1, %cst {dimension_numbers = #tpu.dot_dimension_numbers<[1], [0], [0], [1], [0, 0, 1, 1], [], []>} : vector<4x16xf32>, vector<16x128xf32>, vector<4x128xf32> -> vector<4x128xf32>
    %c0_3 = arith.constant 0 : index
    %c0_4 = arith.constant 0 : index
    %3 = vector.load %arg3[%c0_3, %c0_4] : memref<1x128xf32, #tpu.memory_space<vmem>>, vector<1x128xf32>
    %4 = vector.broadcast %3 : vector<1x128xf32> to vector<4x128xf32>
    %5 = arith.addf %2, %4 : vector<4x128xf32>
    %cst_5 = arith.constant 0.000000e+00 : f32
    %6 = vector.broadcast %cst_5 : f32 to vector<4x128xf32>
    %7 = arith.maximumf %5, %6 : vector<4x128xf32>
    %c0_6 = arith.constant 0 : index
    %c0_7 = arith.constant 0 : index
    %8 = vector.load %arg4[%c0_6, %c0_7] : memref<128x128xf32, #tpu.memory_space<vmem>>, vector<128x128xf32>
    %cst_8 = arith.constant dense<0.000000e+00> : vector<4x128xf32>
    %9 = tpu.matmul %7, %8, %cst_8 {dimension_numbers = #tpu.dot_dimension_numbers<[1], [0], [0], [1], [0, 0, 1, 1], [], []>} : vector<4x128xf32>, vector<128x128xf32>, vector<4x128xf32> -> vector<4x128xf32>
    %c0_9 = arith.constant 0 : index
    %c0_10 = arith.constant 0 : index
    %10 = vector.load %arg5[%c0_9, %c0_10] : memref<1x128xf32, #tpu.memory_space<vmem>>, vector<1x128xf32>
    %11 = vector.broadcast %10 : vector<1x128xf32> to vector<4x128xf32>
    %12 = arith.addf %9, %11 : vector<4x128xf32>
    %cst_11 = arith.constant 0.000000e+00 : f32
    %13 = vector.broadcast %cst_11 : f32 to vector<4x128xf32>
    %14 = arith.maximumf %12, %13 : vector<4x128xf32>
    %c0_12 = arith.constant 0 : index
    %c0_13 = arith.constant 0 : index
    %15 = vector.load %arg6[%c0_12, %c0_13] : memref<128x8xf32, #tpu.memory_space<vmem>>, vector<128x8xf32>
    %cst_14 = arith.constant dense<0.000000e+00> : vector<4x8xf32>
    %16 = tpu.matmul %14, %15, %cst_14 {dimension_numbers = #tpu.dot_dimension_numbers<[1], [0], [0], [1], [0, 0, 1, 1], [], []>} : vector<4x128xf32>, vector<128x8xf32>, vector<4x8xf32> -> vector<4x8xf32>
    %c0_15 = arith.constant 0 : index
    %c0_16 = arith.constant 0 : index
    %17 = vector.load %arg7[%c0_15, %c0_16] : memref<1x8xf32, #tpu.memory_space<vmem>>, vector<1x8xf32>
    %18 = vector.broadcast %17 : vector<1x8xf32> to vector<4x8xf32>
    %19 = arith.addf %16, %18 : vector<4x8xf32>
    %20 = math.tanh %19 : vector<4x8xf32>
    %cst_17 = arith.constant 2.000000e+00 : f32
    %21 = vector.broadcast %cst_17 : f32 to vector<4x8xf32>
    %22 = arith.mulf %21, %20 : vector<4x8xf32>
    %c0_18 = arith.constant 0 : index
    %c0_19 = arith.constant 0 : index
    %23 = vector.load %arg8[%c0_18, %c0_19] : memref<4x8xf32, #tpu.memory_space<vmem>>, vector<4x8xf32>
    tpu.vector_store %arg8[%c0_18, %c0_19], %22 {strides = array<i32>} : memref<4x8xf32, #tpu.memory_space<vmem>>, vector<4x8xf32>,
    return
  }
  func.func @transform_0(%arg0: i32) -> (i32, i32) {
    %c0_i32 = arith.constant 0 : i32
    %c0_i32_0 = arith.constant 0 : i32
    return %arg0, %c0_i32 : i32, i32
  }
  func.func @transform_1(%arg0: i32) -> (i32, i32) {
    %c0_i32 = arith.constant 0 : i32
    %c0_i32_0 = arith.constant 0 : i32
    %c0_i32_1 = arith.constant 0 : i32
    return %c0_i32, %c0_i32_0 : i32, i32
  }
  func.func @transform_2(%arg0: i32) -> (i32, i32) {
    %c0_i32 = arith.constant 0 : i32
    %c0_i32_0 = arith.constant 0 : i32
    %c0_i32_1 = arith.constant 0 : i32
    return %c0_i32, %c0_i32_0 : i32, i32
  }
  func.func @transform_3(%arg0: i32) -> (i32, i32) {
    %c0_i32 = arith.constant 0 : i32
    %c0_i32_0 = arith.constant 0 : i32
    %c0_i32_1 = arith.constant 0 : i32
    return %c0_i32, %c0_i32_0 : i32, i32
  }
  func.func @transform_4(%arg0: i32) -> (i32, i32) {
    %c0_i32 = arith.constant 0 : i32
    %c0_i32_0 = arith.constant 0 : i32
    %c0_i32_1 = arith.constant 0 : i32
    return %c0_i32, %c0_i32_0 : i32, i32
  }
  func.func @transform_5(%arg0: i32) -> (i32, i32) {
    %c0_i32 = arith.constant 0 : i32
    %c0_i32_0 = arith.constant 0 : i32
    %c0_i32_1 = arith.constant 0 : i32
    return %c0_i32, %c0_i32_0 : i32, i32
  }
  func.func @transform_6(%arg0: i32) -> (i32, i32) {
    %c0_i32 = arith.constant 0 : i32
    %c0_i32_0 = arith.constant 0 : i32
    %c0_i32_1 = arith.constant 0 : i32
    return %c0_i32, %c0_i32_0 : i32, i32
  }
  func.func @transform_7(%arg0: i32) -> (i32, i32) {
    %c0_i32 = arith.constant 0 : i32
    %c0_i32_0 = arith.constant 0 : i32
    return %arg0, %c0_i32 : i32, i32
  }
}

module attributes {stable_mosaic.version = 11 : i64} {
  func.func @_actor_mlp_kernel(%arg0: i32, %arg1: memref<4x16xf32, #tpu.memory_space<vmem>>, %arg2: memref<16x128xf32, #tpu.memory_space<vmem>>, %arg3: memref<1x128xf32, #tpu.memory_space<vmem>>, %arg4: memref<128x128xf32, #tpu.memory_space<vmem>>, %arg5: memref<1x128xf32, #tpu.memory_space<vmem>>, %arg6: memref<128x8xf32, #tpu.memory_space<vmem>>, %arg7: memref<1x8xf32, #tpu.memory_space<vmem>>, %arg8: memref<4x8xf32, #tpu.memory_space<vmem>>) attributes {dimension_semantics = [#tpu.dimension_semantics<parallel>], iteration_bounds = array<i64: 1>, scalar_prefetch = 0 : i64, scratch_operands = 0 : i64, tpu.core_type = #tpu.core_type<tc>, window_params = [{transform_indices = @transform_0, window_bounds = array<i64: 4, 16>}, {pipeline_mode = #tpu.pipeline_mode<synchronous>, transform_indices = @transform_1, window_bounds = array<i64: 16, 128>}, {pipeline_mode = #tpu.pipeline_mode<synchronous>, transform_indices = @transform_2, window_bounds = array<i64: 1, 128>}, {pipeline_mode = #tpu.pipeline_mode<synchronous>, transform_indices = @transform_3, window_bounds = array<i64: 128, 128>}, {pipeline_mode = #tpu.pipeline_mode<synchronous>, transform_indices = @transform_4, window_bounds = array<i64: 1, 128>}, {pipeline_mode = #tpu.pipeline_mode<synchronous>, transform_indices = @transform_5, window_bounds = array<i64: 128, 8>}, {pipeline_mode = #tpu.pipeline_mode<synchronous>, transform_indices = @transform_6, window_bounds = array<i64: 1, 8>}, {transform_indices = @transform_7, window_bounds = array<i64: 4, 8>}]} {
    %c0 = arith.constant 0 : index
    %c0_0 = arith.constant 0 : index
    %0 = vector.load %arg1[%c0, %c0_0] : memref<4x16xf32, #tpu.memory_space<vmem>>, vector<4x16xf32>
    %c0_1 = arith.constant 0 : index
    %c0_2 = arith.constant 0 : index
    %1 = vector.load %arg2[%c0_1, %c0_2] : memref<16x128xf32, #tpu.memory_space<vmem>>, vector<16x128xf32>
    %cst = arith.constant dense<0.000000e+00> : vector<4x128xf32>
    %2 = tpu.matmul %0, %1, %cst {dimension_numbers = #tpu.dot_dimension_numbers<[1], [0], [0], [1], [0, 0, 1, 1], [], []>} : vector<4x16xf32>, vector<16x128xf32>, vector<4x128xf32> -> vector<4x128xf32>
    %c0_3 = arith.constant 0 : index
    %c0_4 = arith.constant 0 : index
    %3 = vector.load %arg3[%c0_3, %c0_4] : memref<1x128xf32, #tpu.memory_space<vmem>>, vector<1x128xf32>
    %4 = vector.broadcast %3 : vector<1x128xf32> to vector<4x128xf32>
    %5 = arith.addf %2, %4 : vector<4x128xf32>
    %cst_5 = arith.constant 0.000000e+00 : f32
    %6 = vector.broadcast %cst_5 : f32 to vector<4x128xf32>
    %7 = arith.maximumf %5, %6 : vector<4x128xf32>
    %c0_6 = arith.constant 0 : index
    %c0_7 = arith.constant 0 : index
    %8 = vector.load %arg4[%c0_6, %c0_7] : memref<128x128xf32, #tpu.memory_space<vmem>>, vector<128x128xf32>
    %cst_8 = arith.constant dense<0.000000e+00> : vector<4x128xf32>
    %9 = tpu.matmul %7, %8, %cst_8 {dimension_numbers = #tpu.dot_dimension_numbers<[1], [0], [0], [1], [0, 0, 1, 1], [], []>} : vector<4x128xf32>, vector<128x128xf32>, vector<4x128xf32> -> vector<4x128xf32>
    %c0_9 = arith.constant 0 : index
    %c0_10 = arith.constant 0 : index
    %10 = vector.load %arg5[%c0_9, %c0_10] : memref<1x128xf32, #tpu.memory_space<vmem>>, vector<1x128xf32>
    %11 = vector.broadcast %10 : vector<1x128xf32> to vector<4x128xf32>
    %12 = arith.addf %9, %11 : vector<4x128xf32>
    %cst_11 = arith.constant 0.000000e+00 : f32
    %13 = vector.broadcast %cst_11 : f32 to vector<4x128xf32>
    %14 = arith.maximumf %12, %13 : vector<4x128xf32>
    %c0_12 = arith.constant 0 : index
    %c0_13 = arith.constant 0 : index
    %15 = vector.load %arg6[%c0_12, %c0_13] : memref<128x8xf32, #tpu.memory_space<vmem>>, vector<128x8xf32>
    %cst_14 = arith.constant dense<0.000000e+00> : vector<4x8xf32>
    %16 = tpu.matmul %14, %15, %cst_14 {dimension_numbers = #tpu.dot_dimension_numbers<[1], [0], [0], [1], [0, 0, 1, 1], [], []>} : vector<4x128xf32>, vector<128x8xf32>, vector<4x8xf32> -> vector<4x8xf32>
    %c0_15 = arith.constant 0 : index
    %c0_16 = arith.constant 0 : index
    %17 = vector.load %arg7[%c0_15, %c0_16] : memref<1x8xf32, #tpu.memory_space<vmem>>, vector<1x8xf32>
    %18 = vector.broadcast %17 : vector<1x8xf32> to vector<4x8xf32>
    %19 = arith.addf %16, %18 : vector<4x8xf32>
    %20 = math.tanh %19 : vector<4x8xf32>
    %cst_17 = arith.constant 2.000000e+00 : f32
    %21 = vector.broadcast %cst_17 : f32 to vector<4x8xf32>
    %22 = arith.mulf %21, %20 : vector<4x8xf32>
    %c0_18 = arith.constant 0 : index
    %c0_19 = arith.constant 0 : index
    %23 = vector.load %arg8[%c0_18, %c0_19] : memref<4x8xf32, #tpu.memory_space<vmem>>, vector<4x8xf32>
    tpu.vector_store %arg8[%c0_18, %c0_19], %22 {strides = array<i32>} : memref<4x8xf32, #tpu.memory_space<vmem>>, vector<4x8xf32>,
    return
  }
  func.func @transform_0(%arg0: i32) -> (i32, i32) {
    %c0_i32 = arith.constant 0 : i32
    %c0_i32_0 = arith.constant 0 : i32
    return %arg0, %c0_i32 : i32, i32
  }
  func.func @transform_1(%arg0: i32) -> (i32, i32) {
    %c0_i32 = arith.constant 0 : i32
    %c0_i32_0 = arith.constant 0 : i32
    %c0_i32_1 = arith.constant 0 : i32
    return %c0_i32, %c0_i32_0 : i32, i32
  }
  func.func @transform_2(%arg0: i32) -> (i32, i32) {
    %c0_i32 = arith.constant 0 : i32
    %c0_i32_0 = arith.constant 0 : i32
    %c0_i32_1 = arith.constant 0 : i32
    return %c0_i32, %c0_i32_0 : i32, i32
  }
  func.func @transform_3(%arg0: i32) -> (i32, i32) {
    %c0_i32 = arith.constant 0 : i32
    %c0_i32_0 = arith.constant 0 : i32
    %c0_i32_1 = arith.constant 0 : i32
    return %c0_i32, %c0_i32_0 : i32, i32
  }
  func.func @transform_4(%arg0: i32) -> (i32, i32) {
    %c0_i32 = arith.constant 0 : i32
    %c0_i32_0 = arith.constant 0 : i32
    %c0_i32_1 = arith.constant 0 : i32
    return %c0_i32, %c0_i32_0 : i32, i32
  }
  func.func @transform_5(%arg0: i32) -> (i32, i32) {
    %c0_i32 = arith.constant 0 : i32
    %c0_i32_0 = arith.constant 0 : i32
    %c0_i32_1 = arith.constant 0 : i32
    return %c0_i32, %c0_i32_0 : i32, i32
  }
  func.func @transform_6(%arg0: i32) -> (i32, i32) {
    %c0_i32 = arith.constant 0 : i32
    %c0_i32_0 = arith.constant 0 : i32
    %c0_i32_1 = arith.constant 0 : i32
    return %c0_i32, %c0_i32_0 : i32, i32
  }
  func.func @transform_7(%arg0: i32) -> (i32, i32) {
    %c0_i32 = arith.constant 0 : i32
    %c0_i32_0 = arith.constant 0 : i32
    return %arg0, %c0_i32 : i32, i32
  }
}

</mosaic_0001>

<llo_original>
// kernel: tpu_custom_call.1
$region0: #{tpu_custom_call.1}
  #allocation0 [shape = 'u32[]', space=smem, size = 0x4, offset = 0x4, fixed_abs, tag = 'smem constant byte address 0x4 - core index']
  #allocation1 [shape = 'u32[72,128]{1,0:T(1,128)}', space=vmem, size = 0x9000, scoped, tag = 'internal scratch']
  %s0 = inlined_call_operand.vmem [shape: f32[4,16], index: 0, kind: input, shape index: {}]
  %s1 = inlined_call_operand.hbm [shape: f32[16,128], index: 1, kind: input, shape index: {}]
  %s2 = inlined_call_operand.vmem [shape: f32[1,128], index: 2, kind: input, shape index: {}]
  %s3 = inlined_call_operand.vmem [shape: f32[128,128], index: 3, kind: input, shape index: {}]
  %s4 = inlined_call_operand.vmem [shape: f32[1,128], index: 4, kind: input, shape index: {}]
  %s5 = inlined_call_operand.vmem [shape: f32[128,8], index: 5, kind: input, shape index: {}]
  %s6 = inlined_call_operand.vmem [shape: f32[1,8], index: 6, kind: input, shape index: {}]
  %s7 = inlined_call_operand.hbm [shape: f32[4,8], index: 7, kind: output, shape index: {}]
  %s8 = sld [smem:[#allocation0]]
  $region42: #{tpu_custom_call.1} parent=0
    _
  %s10 = ssub.s32 1, %s8
  %s11 = scalar_select 0, %s10, %s8
  $region1: #{tpu_custom_call.1} parent=0
    #allocation2 [shape = 'u8[8192]{0}', space=vmem, size = 0x2000, scoped, tag = 'input window, operand 1, single buffered']
    #allocation3 [shape = 's32[1]{0}', space=sflag, size = 0x4, scoped, tag = 'scoped memory for tpu_custom_call.1']
    #allocation4 [shape = 's32[1]{0}', space=sflag, size = 0x4, scoped, tag = 'scoped memory for tpu_custom_call.1']
    #allocation5 [shape = 'u8[2048]{0}', space=vmem, size = 0x800, scoped, tag = 'output window, operand 0, single buffered']
    %12 = vsyncpa [#allocation3], 0
    %13 = vsyncpa [#allocation4], 0
    // Predicated region
    $region2: #{tpu_custom_call.1} parent=1 // pred_check
      _
    $region3: #{tpu_custom_call.1} parent=1 // pred_check_branch
      %15 = sbr.rel (0) target = $region5
    $region4: #{tpu_custom_call.1} parent=1 // pred_region
      _
    $region5: #{tpu_custom_call.1} parent=1 // pred_fallthru
      _
    // Predicated region
    $region6: #{tpu_custom_call.1} parent=1 // pred_check
      _
    $region7: #{tpu_custom_call.1} parent=1 // pred_check_branch
      %17 = sbr.rel (0) target = $region9
    $region8: #{tpu_custom_call.1} parent=1 // pred_region
      %19 = vsyncadd [#allocation3], 0
      %s20 = sshll.u32 %s1, 4
      %s21 = int_to_ptr.hbm [resolvable:$true] %s20
      %s22 = sshll.u32 [#allocation2], 4
      %s23 = int_to_ptr.vmem [resolvable:$true] %s22
      %28 = dma.hbm_to_vmem [thread:$0]  %s21, 256, %s23, [#allocation3], 128, 128, 8
    $region9: #{tpu_custom_call.1} parent=1 // pred_fallthru
      _
    // Predicated region
    $region10: #{tpu_custom_call.1} parent=1 // pred_check
      _
    $region11: #{tpu_custom_call.1} parent=1 // pred_check_branch
      %30 = sbr.rel (0) target = $region13
    $region12: #{tpu_custom_call.1} parent=1 // pred_region
      _
    $region13: #{tpu_custom_call.1} parent=1 // pred_fallthru
      _
    // Predicated region
    $region14: #{tpu_custom_call.1} parent=1 // pred_check
      _
    $region15: #{tpu_custom_call.1} parent=1 // pred_check_branch
      %32 = sbr.rel (0) target = $region17
    $region16: #{tpu_custom_call.1} parent=1 // pred_region
      _
    $region17: #{tpu_custom_call.1} parent=1 // pred_fallthru
      _
    // Predicated region
    $region18: #{tpu_custom_call.1} parent=1 // pred_check
      _
    $region19: #{tpu_custom_call.1} parent=1 // pred_check_branch
      %34 = sbr.rel (0) target = $region21
    $region20: #{tpu_custom_call.1} parent=1 // pred_region
      _
    $region21: #{tpu_custom_call.1} parent=1 // pred_fallthru
      _
    // Predicated region
    $region22: #{tpu_custom_call.1} parent=1 // pred_check
      _
    $region23: #{tpu_custom_call.1} parent=1 // pred_check_branch
      %36 = sbr.rel (0) target = $region25
    $region24: #{tpu_custom_call.1} parent=1 // pred_region
      _
    $region25: #{tpu_custom_call.1} parent=1 // pred_fallthru
      _
    // Predicated region
    $region26: #{tpu_custom_call.1} parent=1 // pred_check
      _
    $region27: #{tpu_custom_call.1} parent=1 // pred_check_branch
      %38 = sbr.rel (0) target = $region29
    $region28: #{tpu_custom_call.1} parent=1 // pred_region
      _
    $region29: #{tpu_custom_call.1} parent=1 // pred_fallthru
      _
    // Predicated region
    $region30: #{tpu_custom_call.1} parent=1 // pred_check
      _
    $region31: #{tpu_custom_call.1} parent=1 // pred_check_branch
      %40 = sbr.rel (0) target = $region33
    $region32: #{tpu_custom_call.1} parent=1 // pred_region
      %42 = dma.done [#allocation3], 256
    $region33: #{tpu_custom_call.1} parent=1 // pred_fallthru
      _
    %v43 = vld [vmem:[%s0] sm:$0xf]
    %v44 = vld [vmem:[#allocation2] sm:$0xff]
    %v45 = vld [vmem:[#allocation2 + $0x8] sm:$0xff]
    %v46 = vld [vmem:[%s2] sm:$0x1]
    %v48 = vperm.slane %v46, 0
    %vm50 = vcmask 130048
    %v52 = vsel %vm50, %v43, 0
    %54 = vmatpush.msra.mxu0 0.0
    %55 = vmatpush.msra.mxu0 0.0
    %56 = vmatpush.msra.mxu0 0.0
    %57 = vmatpush.msra.mxu0 0.0
    %58 = vmatpush.msra.mxu0 0.0
    %59 = vmatpush.msra.mxu0 0.0
    %60 = vmatpush.msra.mxu0 0.0
    %61 = vmatpush.msra.mxu0 0.0
    %62 = vmatpush.msra.mxu0 0.0
    %63 = vmatpush.msra.mxu0 0.0
    %64 = vmatpush.msra.mxu0 0.0
    %65 = vmatpush.msra.mxu0 0.0
    %66 = vmatpush.msra.mxu0 0.0
    %67 = vmatpush.msra.mxu0 0.0
    %68 = vmatpush.msra.mxu0 %v45
    %69 = vmatpush.msra.mxu0 %v44
    %70 = vmatmul.f32.gmra.mxu0 %v52
    %v71 = vpop.f32.mrf.mxu0
    %v72 = vadd.f32 %v48, %v71
    %73 = vdwg.mxu0
    %v74 = vmax.f32 %v72, 0.0
    %v75 = vld [vmem:[%s3] sm:$0xff]
    %v76 = vld [vmem:[%s3 + $0x8] sm:$0xff]
    %v77 = vld [vmem:[%s3 + $0x10] sm:$0xff]
    %v78 = vld [vmem:[%s3 + $0x18] sm:$0xff]
    %v79 = vld [vmem:[%s3 + $0x20] sm:$0xff]
    %v80 = vld [vmem:[%s3 + $0x28] sm:$0xff]
    %v81 = vld [vmem:[%s3 + $0x30] sm:$0xff]
    %v82 = vld [vmem:[%s3 + $0x38] sm:$0xff]
    %v83 = vld [vmem:[%s3 + $0x40] sm:$0xff]
    %v84 = vld [vmem:[%s3 + $0x48] sm:$0xff]
    %v85 = vld [vmem:[%s3 + $0x50] sm:$0xff]
    %v86 = vld [vmem:[%s3 + $0x58] sm:$0xff]
    %v87 = vld [vmem:[%s3 + $0x60] sm:$0xff]
    %v88 = vld [vmem:[%s3 + $0x68] sm:$0xff]
    %v89 = vld [vmem:[%s3 + $0x70] sm:$0xff]
    %v90 = vld [vmem:[%s3 + $0x78] sm:$0xff]
    %v91 = vld [vmem:[%s4] sm:$0x1]
    %v93 = vperm.slane %v91, 0
    %95 = vmatpush.msra.mxu0 %v90
    %96 = vmatpush.msra.mxu0 %v89
    %97 = vmatpush.msra.mxu0 %v88
    %98 = vmatpush.msra.mxu0 %v87
    %99 = vmatpush.msra.mxu0 %v86
    %100 = vmatpush.msra.mxu0 %v85
    %101 = vmatpush.msra.mxu0 %v84
    %102 = vmatpush.msra.mxu0 %v83
    %103 = vmatpush.msra.mxu0 %v82
    %104 = vmatpush.msra.mxu0 %v81
    %105 = vmatpush.msra.mxu0 %v80
    %106 = vmatpush.msra.mxu0 %v79
    %107 = vmatpush.msra.mxu0 %v78
    %108 = vmatpush.msra.mxu0 %v77
    %109 = vmatpush.msra.mxu0 %v76
    %110 = vmatpush.msra.mxu0 %v75
    %111 = vmatmul.f32.gmra.mxu0 %v74
    %v112 = vpop.f32.mrf.mxu0
    %v113 = vadd.f32 %v93, %v112
    %114 = vdwg.mxu0
    %v115 = vmax.f32 %v113, 0.0
    %v116 = vld [vmem:[%s5] sm:$0xff]
    %v117 = vld [vmem:[%s5 + $0x8] sm:$0xff]
    %v118 = vld [vmem:[%s5 + $0x10] sm:$0xff]
    %v119 = vld [vmem:[%s5 + $0x18] sm:$0xff]
    %v120 = vld [vmem:[%s5 + $0x20] sm:$0xff]
    %v121 = vld [vmem:[%s5 + $0x28] sm:$0xff]
    %v122 = vld [vmem:[%s5 + $0x30] sm:$0xff]
    %v123 = vld [vmem:[%s5 + $0x38] sm:$0xff]
    %v124 = vld [vmem:[%s5 + $0x40] sm:$0xff]
    %v125 = vld [vmem:[%s5 + $0x48] sm:$0xff]
    %v126 = vld [vmem:[%s5 + $0x50] sm:$0xff]
    %v127 = vld [vmem:[%s5 + $0x58] sm:$0xff]
    %v128 = vld [vmem:[%s5 + $0x60] sm:$0xff]
    %v129 = vld [vmem:[%s5 + $0x68] sm:$0xff]
    %v130 = vld [vmem:[%s5 + $0x70] sm:$0xff]
    %v131 = vld [vmem:[%s5 + $0x78] sm:$0xff]
    %v132 = vld [vmem:[%s6] sm:$0x1]
    %v134 = vperm.slane %v132, 0
    %136 = vmatpush.msra.mxu0 %v131
    %137 = vmatpush.msra.mxu0 %v130
    %138 = vmatpush.msra.mxu0 %v129
    %139 = vmatpush.msra.mxu0 %v128
    %140 = vmatpush.msra.mxu0 %v127
    %141 = vmatpush.msra.mxu0 %v126
    %142 = vmatpush.msra.mxu0 %v125
    %143 = vmatpush.msra.mxu0 %v124
    %144 = vmatpush.msra.mxu0 %v123
    %145 = vmatpush.msra.mxu0 %v122
    %146 = vmatpush.msra.mxu0 %v121
    %147 = vmatpush.msra.mxu0 %v120
    %148 = vmatpush.msra.mxu0 %v119
    %149 = vmatpush.msra.mxu0 %v118
    %150 = vmatpush.msra.mxu0 %v117
    %151 = vmatpush.msra.mxu0 %v116
    %152 = vmatmul.f32.gmra.mxu0 %v115
    %v153 = vpop.f32.mrf.mxu0
    %v154 = vadd.f32 %v134, %v153
    %155 = vdwg.mxu0
    %v156 = vtanh.pop %v154
    %v157 = vmul.f32 %v156, 2.0
    %vm158 = vcmask 60416
    %159 = vst.msk [vmem:[#allocation5] sm:$0xf] %vm158, %v157
    // Predicated region
    $region34: #{tpu_custom_call.1} parent=1 // pred_check
      _
    $region35: #{tpu_custom_call.1} parent=1 // pred_check_branch
      %161 = sbr.rel (0) target = $region37
    $region36: #{tpu_custom_call.1} parent=1 // pred_region
      %163 = vsyncadd [#allocation4], 0
      %s165 = sshll.u32 [#allocation5], 4
      %s166 = int_to_ptr.vmem [resolvable:$true] %s165
      %s167 = sshll.u32 %s7, 4
      %s168 = int_to_ptr.hbm [resolvable:$true] %s167
      %170 = dma.vmem_to_hbm [thread:$0]  %s166, 64, %s168, [#allocation4]
    $region37: #{tpu_custom_call.1} parent=1 // pred_fallthru
      _
    // Predicated region
    $region38: #{tpu_custom_call.1} parent=1 // pred_check
      _
    $region39: #{tpu_custom_call.1} parent=1 // pred_check_branch
      %172 = sbr.rel (0) target = $region41
    $region40: #{tpu_custom_call.1} parent=1 // pred_region
      %174 = dma.done [#allocation4], 64
    $region41: #{tpu_custom_call.1} parent=1 // pred_fallthru
      _
    %175 = vsyncpa [#allocation3], 1
    %176 = vsyncpa [#allocation4], 1

// kernel: tpu_custom_call.1
$region0: #{tpu_custom_call.1}
  #allocation0 [shape = 'u32[]', space=smem, size = 0x4, offset = 0x4, fixed_abs, tag = 'smem constant byte address 0x4 - core index']
  #allocation1 [shape = 'u32[72,128]{1,0:T(1,128)}', space=vmem, size = 0x9000, scoped, tag = 'internal scratch']
  %s0 = inlined_call_operand.vmem [shape: f32[4,16], index: 0, kind: input, shape index: {}]
  %s1 = inlined_call_operand.hbm [shape: f32[16,128], index: 1, kind: input, shape index: {}]
  %s2 = inlined_call_operand.vmem [shape: f32[1,128], index: 2, kind: input, shape index: {}]
  %s3 = inlined_call_operand.vmem [shape: f32[128,128], index: 3, kind: input, shape index: {}]
  %s4 = inlined_call_operand.vmem [shape: f32[1,128], index: 4, kind: input, shape index: {}]
  %s5 = inlined_call_operand.vmem [shape: f32[128,8], index: 5, kind: input, shape index: {}]
  %s6 = inlined_call_operand.vmem [shape: f32[1,8], index: 6, kind: input, shape index: {}]
  %s7 = inlined_call_operand.hbm [shape: f32[4,8], index: 7, kind: output, shape index: {}]
  %s8 = sld [smem:[#allocation0]]
  $region42: #{tpu_custom_call.1} parent=0
    _
  %s10 = ssub.s32 1, %s8
  %s11 = scalar_select 0, %s10, %s8
  $region1: #{tpu_custom_call.1} parent=0
    #allocation2 [shape = 'u8[8192]{0}', space=vmem, size = 0x2000, scoped, tag = 'input window, operand 1, single buffered']
    #allocation3 [shape = 's32[1]{0}', space=sflag, size = 0x4, scoped, tag = 'scoped memory for tpu_custom_call.1']
    #allocation4 [shape = 's32[1]{0}', space=sflag, size = 0x4, scoped, tag = 'scoped memory for tpu_custom_call.1']
    #allocation5 [shape = 'u8[2048]{0}', space=vmem, size = 0x800, scoped, tag = 'output window, operand 0, single buffered']
    %12 = vsyncpa [#allocation3], 0
    %13 = vsyncpa [#allocation4], 0
    // Predicated region
    $region2: #{tpu_custom_call.1} parent=1 // pred_check
      _
    $region3: #{tpu_custom_call.1} parent=1 // pred_check_branch
      %15 = sbr.rel (0) target = $region5
    $region4: #{tpu_custom_call.1} parent=1 // pred_region
      _
    $region5: #{tpu_custom_call.1} parent=1 // pred_fallthru
      _
    // Predicated region
    $region6: #{tpu_custom_call.1} parent=1 // pred_check
      _
    $region7: #{tpu_custom_call.1} parent=1 // pred_check_branch
      %17 = sbr.rel (0) target = $region9
    $region8: #{tpu_custom_call.1} parent=1 // pred_region
      %19 = vsyncadd [#allocation3], 0
      %s20 = sshll.u32 %s1, 4
      %s21 = int_to_ptr.hbm [resolvable:$true] %s20
      %s22 = sshll.u32 [#allocation2], 4
      %s23 = int_to_ptr.vmem [resolvable:$true] %s22
      %28 = dma.hbm_to_vmem [thread:$0]  %s21, 256, %s23, [#allocation3], 128, 128, 8
    $region9: #{tpu_custom_call.1} parent=1 // pred_fallthru
      _
    // Predicated region
    $region10: #{tpu_custom_call.1} parent=1 // pred_check
      _
    $region11: #{tpu_custom_call.1} parent=1 // pred_check_branch
      %30 = sbr.rel (0) target = $region13
    $region12: #{tpu_custom_call.1} parent=1 // pred_region
      _
    $region13: #{tpu_custom_call.1} parent=1 // pred_fallthru
      _
    // Predicated region
    $region14: #{tpu_custom_call.1} parent=1 // pred_check
      _
    $region15: #{tpu_custom_call.1} parent=1 // pred_check_branch
      %32 = sbr.rel (0) target = $region17
    $region16: #{tpu_custom_call.1} parent=1 // pred_region
      _
    $region17: #{tpu_custom_call.1} parent=1 // pred_fallthru
      _
    // Predicated region
    $region18: #{tpu_custom_call.1} parent=1 // pred_check
      _
    $region19: #{tpu_custom_call.1} parent=1 // pred_check_branch
      %34 = sbr.rel (0) target = $region21
    $region20: #{tpu_custom_call.1} parent=1 // pred_region
      _
    $region21: #{tpu_custom_call.1} parent=1 // pred_fallthru
      _
    // Predicated region
    $region22: #{tpu_custom_call.1} parent=1 // pred_check
      _
    $region23: #{tpu_custom_call.1} parent=1 // pred_check_branch
      %36 = sbr.rel (0) target = $region25
    $region24: #{tpu_custom_call.1} parent=1 // pred_region
      _
    $region25: #{tpu_custom_call.1} parent=1 // pred_fallthru
      _
    // Predicated region
    $region26: #{tpu_custom_call.1} parent=1 // pred_check
      _
    $region27: #{tpu_custom_call.1} parent=1 // pred_check_branch
      %38 = sbr.rel (0) target = $region29
    $region28: #{tpu_custom_call.1} parent=1 // pred_region
      _
    $region29: #{tpu_custom_call.1} parent=1 // pred_fallthru
      _
    // Predicated region
    $region30: #{tpu_custom_call.1} parent=1 // pred_check
      _
    $region31: #{tpu_custom_call.1} parent=1 // pred_check_branch
      %40 = sbr.rel (0) target = $region33
    $region32: #{tpu_custom_call.1} parent=1 // pred_region
      %42 = dma.done [#allocation3], 256
    $region33: #{tpu_custom_call.1} parent=1 // pred_fallthru
      _
    %v43 = vld [vmem:[%s0] sm:$0xf]
    %v44 = vld [vmem:[#allocation2] sm:$0xff]
    %v45 = vld [vmem:[#allocation2 + $0x8] sm:$0xff]
    %v46 = vld [vmem:[%s2] sm:$0x1]
    %v48 = vperm.slane %v46, 0
    %vm50 = vcmask 130048
    %v52 = vsel %vm50, %v43, 0
    %54 = vmatpush.msra.mxu0 0.0
    %55 = vmatpush.msra.mxu0 0.0
    %56 = vmatpush.msra.mxu0 0.0
    %57 = vmatpush.msra.mxu0 0.0
    %58 = vmatpush.msra.mxu0 0.0
    %59 = vmatpush.msra.mxu0 0.0
    %60 = vmatpush.msra.mxu0 0.0
    %61 = vmatpush.msra.mxu0 0.0
    %62 = vmatpush.msra.mxu0 0.0
    %63 = vmatpush.msra.mxu0 0.0
    %64 = vmatpush.msra.mxu0 0.0
    %65 = vmatpush.msra.mxu0 0.0
    %66 = vmatpush.msra.mxu0 0.0
    %67 = vmatpush.msra.mxu0 0.0
    %68 = vmatpush.msra.mxu0 %v45
    %69 = vmatpush.msra.mxu0 %v44
    %70 = vmatmul.f32.gmra.mxu0 %v52
    %v71 = vpop.f32.mrf.mxu0
    %v72 = vadd.f32 %v48, %v71
    %73 = vdwg.mxu0
    %v74 = vmax.f32 %v72, 0.0
    %v75 = vld [vmem:[%s3] sm:$0xff]
    %v76 = vld [vmem:[%s3 + $0x8] sm:$0xff]
    %v77 = vld [vmem:[%s3 + $0x10] sm:$0xff]
    %v78 = vld [vmem:[%s3 + $0x18] sm:$0xff]
    %v79 = vld [vmem:[%s3 + $0x20] sm:$0xff]
    %v80 = vld [vmem:[%s3 + $0x28] sm:$0xff]
    %v81 = vld [vmem:[%s3 + $0x30] sm:$0xff]
    %v82 = vld [vmem:[%s3 + $0x38] sm:$0xff]
    %v83 = vld [vmem:[%s3 + $0x40] sm:$0xff]
    %v84 = vld [vmem:[%s3 + $0x48] sm:$0xff]
    %v85 = vld [vmem:[%s3 + $0x50] sm:$0xff]
    %v86 = vld [vmem:[%s3 + $0x58] sm:$0xff]
    %v87 = vld [vmem:[%s3 + $0x60] sm:$0xff]
    %v88 = vld [vmem:[%s3 + $0x68] sm:$0xff]
    %v89 = vld [vmem:[%s3 + $0x70] sm:$0xff]
    %v90 = vld [vmem:[%s3 + $0x78] sm:$0xff]
    %v91 = vld [vmem:[%s4] sm:$0x1]
    %v93 = vperm.slane %v91, 0
    %95 = vmatpush.msra.mxu0 %v90
    %96 = vmatpush.msra.mxu0 %v89
    %97 = vmatpush.msra.mxu0 %v88
    %98 = vmatpush.msra.mxu0 %v87
    %99 = vmatpush.msra.mxu0 %v86
    %100 = vmatpush.msra.mxu0 %v85
    %101 = vmatpush.msra.mxu0 %v84
    %102 = vmatpush.msra.mxu0 %v83
    %103 = vmatpush.msra.mxu0 %v82
    %104 = vmatpush.msra.mxu0 %v81
    %105 = vmatpush.msra.mxu0 %v80
    %106 = vmatpush.msra.mxu0 %v79
    %107 = vmatpush.msra.mxu0 %v78
    %108 = vmatpush.msra.mxu0 %v77
    %109 = vmatpush.msra.mxu0 %v76
    %110 = vmatpush.msra.mxu0 %v75
    %111 = vmatmul.f32.gmra.mxu0 %v74
    %v112 = vpop.f32.mrf.mxu0
    %v113 = vadd.f32 %v93, %v112
    %114 = vdwg.mxu0
    %v115 = vmax.f32 %v113, 0.0
    %v116 = vld [vmem:[%s5] sm:$0xff]
    %v117 = vld [vmem:[%s5 + $0x8] sm:$0xff]
    %v118 = vld [vmem:[%s5 + $0x10] sm:$0xff]
    %v119 = vld [vmem:[%s5 + $0x18] sm:$0xff]
    %v120 = vld [vmem:[%s5 + $0x20] sm:$0xff]
    %v121 = vld [vmem:[%s5 + $0x28] sm:$0xff]
    %v122 = vld [vmem:[%s5 + $0x30] sm:$0xff]
    %v123 = vld [vmem:[%s5 + $0x38] sm:$0xff]
    %v124 = vld [vmem:[%s5 + $0x40] sm:$0xff]
    %v125 = vld [vmem:[%s5 + $0x48] sm:$0xff]
    %v126 = vld [vmem:[%s5 + $0x50] sm:$0xff]
    %v127 = vld [vmem:[%s5 + $0x58] sm:$0xff]
    %v128 = vld [vmem:[%s5 + $0x60] sm:$0xff]
    %v129 = vld [vmem:[%s5 + $0x68] sm:$0xff]
    %v130 = vld [vmem:[%s5 + $0x70] sm:$0xff]
    %v131 = vld [vmem:[%s5 + $0x78] sm:$0xff]
    %v132 = vld [vmem:[%s6] sm:$0x1]
    %v134 = vperm.slane %v132, 0
    %136 = vmatpush.msra.mxu0 %v131
    %137 = vmatpush.msra.mxu0 %v130
    %138 = vmatpush.msra.mxu0 %v129
    %139 = vmatpush.msra.mxu0 %v128
    %140 = vmatpush.msra.mxu0 %v127
    %141 = vmatpush.msra.mxu0 %v126
    %142 = vmatpush.msra.mxu0 %v125
    %143 = vmatpush.msra.mxu0 %v124
    %144 = vmatpush.msra.mxu0 %v123
    %145 = vmatpush.msra.mxu0 %v122
    %146 = vmatpush.msra.mxu0 %v121
    %147 = vmatpush.msra.mxu0 %v120
    %148 = vmatpush.msra.mxu0 %v119
    %149 = vmatpush.msra.mxu0 %v118
    %150 = vmatpush.msra.mxu0 %v117
    %151 = vmatpush.msra.mxu0 %v116
    %152 = vmatmul.f32.gmra.mxu0 %v115
    %v153 = vpop.f32.mrf.mxu0
    %v154 = vadd.f32 %v134, %v153
    %155 = vdwg.mxu0
    %v156 = vtanh.pop %v154
    %v157 = vmul.f32 %v156, 2.0
    %vm158 = vcmask 60416
    %159 = vst.msk [vmem:[#allocation5] sm:$0xf] %vm158, %v157
    // Predicated region
    $region34: #{tpu_custom_call.1} parent=1 // pred_check
      _
    $region35: #{tpu_custom_call.1} parent=1 // pred_check_branch
      %161 = sbr.rel (0) target = $region37
    $region36: #{tpu_custom_call.1} parent=1 // pred_region
      %163 = vsyncadd [#allocation4], 0
      %s165 = sshll.u32 [#allocation5], 4
      %s166 = int_to_ptr.vmem [resolvable:$true] %s165
      %s167 = sshll.u32 %s7, 4
      %s168 = int_to_ptr.hbm [resolvable:$true] %s167
      %170 = dma.vmem_to_hbm [thread:$0]  %s166, 64, %s168, [#allocation4]
    $region37: #{tpu_custom_call.1} parent=1 // pred_fallthru
      _
    // Predicated region
    $region38: #{tpu_custom_call.1} parent=1 // pred_check
      _
    $region39: #{tpu_custom_call.1} parent=1 // pred_check_branch
      %172 = sbr.rel (0) target = $region41
    $region40: #{tpu_custom_call.1} parent=1 // pred_region
      %174 = dma.done [#allocation4], 64
    $region41: #{tpu_custom_call.1} parent=1 // pred_fallthru
      _
    %175 = vsyncpa [#allocation3], 1
    %176 = vsyncpa [#allocation4], 1

</llo_original>
